<compile_context>
chip_gen: v7x
topology: tpu7x:2x2x1
jax: 0.10.0
libtpu: 0.0.40
codegen_flags: <defaults>
</compile_context>

<pallas_src>
import math
import jax
import jax.numpy as jnp
from jax.experimental import pallas as pl
from jax.experimental.pallas import tpu as pltpu

# ---- problem sizes (small, consistent with the module's forward) -------------------
B, S = 2, 8            # batch, sequence length (token grid)
VOCAB = 100            # vocab_size
EMB = 32               # emb_size
N = B * S              # flattened token count
SCALE = math.sqrt(EMB)


# ===================== kernel: unrolled dynamic row gather + scale ===================
def token_embedding_kernel(ids_ref, table_ref, out_ref):
    # ids_ref: (N,) int32 in SMEM; table_ref: (VOCAB, EMB) f32 in VMEM;
    # out_ref: (N, EMB) f32 in VMEM.
    # Static Python loop (N=16): unrolled at trace time, so each SMEM id read and
    # output-row store uses a static offset; only the table row slice is dynamic.
    for i in range(N):
        idx = ids_ref[i]                                   # scalar int32 from SMEM
        idx = jnp.clip(idx, 0, VOCAB - 1)                  # match jnp.take clamping
        row = table_ref[pl.ds(idx, 1), :]                  # (1, EMB) dynamic row load
        out_ref[pl.ds(i, 1), :] = row * SCALE              # (1, EMB) store


# ===================== wrapper =======================================================
def token_embedding(tokens, table):
    ids = tokens.reshape(N).astype(jnp.int32)   # tokens.long() -> int32 on TPU
    out_flat = pl.pallas_call(
        token_embedding_kernel,
        out_shape=jax.ShapeDtypeStruct((N, EMB), jnp.float32),
        in_specs=[pl.BlockSpec(memory_space=pltpu.MemorySpace.SMEM),   # ids: scalar path
                  pl.BlockSpec(memory_space=pltpu.MemorySpace.VMEM)],  # table
        out_specs=pl.BlockSpec(memory_space=pltpu.MemorySpace.VMEM),
    )(ids, table)
    return out_flat.reshape(B, S, EMB)


# ===================== pure-JAX reference ===========================================
def token_embedding_ref(tokens, table):
    return jnp.take(table, tokens.astype(jnp.int32), axis=0) * SCALE


if __name__ == "__main__":
    key = jax.random.PRNGKey(0)
    k_tok, k_tab = jax.random.split(key)
    tokens = jax.random.randint(k_tok, (B, S), 0, VOCAB, dtype=jnp.int32)
    table = jax.random.normal(k_tab, (VOCAB, EMB), jnp.float32)

    out = jax.block_until_ready(token_embedding(tokens, table))
    ref = token_embedding_ref(tokens, table)

    assert out.shape == (B, S, EMB)
    assert bool(jnp.allclose(out, ref, atol=1e-6, rtol=1e-6)), "mismatch vs reference"

    print("KERNEL_OK")
</pallas_src>

<mosaic_0001>
module attributes {stable_mosaic.version = 11 : i64} {
  func.func @token_embedding_kernel(%arg0: memref<16xi32, #tpu.memory_space<smem>>, %arg1: memref<100x32xf32, #tpu.memory_space<vmem>>, %arg2: memref<16x32xf32, #tpu.memory_space<vmem>>) attributes {dimension_semantics = [], scalar_prefetch = 0 : i64, scratch_operands = 0 : i64, tpu.core_type = #tpu.core_type<tc>} {
    %c0 = arith.constant 0 : index
    %0 = memref.load %arg0[%c0] : memref<16xi32, #tpu.memory_space<smem>>
    %c0_i32 = arith.constant 0 : i32
    %c99_i32 = arith.constant 99 : i32
    %1 = arith.maxsi %c0_i32, %0 : i32
    %2 = arith.minsi %c99_i32, %1 : i32
    %3 = arith.index_cast %2 : i32 to index
    %c0_0 = arith.constant 0 : index
    %4 = vector.load %arg1[%3, %c0_0] : memref<100x32xf32, #tpu.memory_space<vmem>>, vector<1x32xf32>
    %cst = arith.constant 5.65685415 : f32
    %5 = vector.broadcast %cst : f32 to vector<1x32xf32>
    %6 = arith.mulf %4, %5 : vector<1x32xf32>
    %c0_1 = arith.constant 0 : index
    %c0_2 = arith.constant 0 : index
    %7 = vector.load %arg2[%c0_1, %c0_2] : memref<16x32xf32, #tpu.memory_space<vmem>>, vector<1x32xf32>
    tpu.vector_store %arg2[%c0_1, %c0_2], %6 {strides = array<i32>} : memref<16x32xf32, #tpu.memory_space<vmem>>, vector<1x32xf32>,
    %c1 = arith.constant 1 : index
    %8 = memref.load %arg0[%c1] : memref<16xi32, #tpu.memory_space<smem>>
    %c0_i32_3 = arith.constant 0 : i32
    %c99_i32_4 = arith.constant 99 : i32
    %9 = arith.maxsi %c0_i32_3, %8 : i32
    %10 = arith.minsi %c99_i32_4, %9 : i32
    %11 = arith.index_cast %10 : i32 to index
    %c0_5 = arith.constant 0 : index
    %12 = vector.load %arg1[%11, %c0_5] : memref<100x32xf32, #tpu.memory_space<vmem>>, vector<1x32xf32>
    %cst_6 = arith.constant 5.65685415 : f32
    %13 = vector.broadcast %cst_6 : f32 to vector<1x32xf32>
    %14 = arith.mulf %12, %13 : vector<1x32xf32>
    %c1_7 = arith.constant 1 : index
    %c0_8 = arith.constant 0 : index
    %15 = vector.load %arg2[%c1_7, %c0_8] : memref<16x32xf32, #tpu.memory_space<vmem>>, vector<1x32xf32>
    tpu.vector_store %arg2[%c1_7, %c0_8], %14 {strides = array<i32>} : memref<16x32xf32, #tpu.memory_space<vmem>>, vector<1x32xf32>,
    %c2 = arith.constant 2 : index
    %16 = memref.load %arg0[%c2] : memref<16xi32, #tpu.memory_space<smem>>
    %c0_i32_9 = arith.constant 0 : i32
    %c99_i32_10 = arith.constant 99 : i32
    %17 = arith.maxsi %c0_i32_9, %16 : i32
    %18 = arith.minsi %c99_i32_10, %17 : i32
    %19 = arith.index_cast %18 : i32 to index
    %c0_11 = arith.constant 0 : index
    %20 = vector.load %arg1[%19, %c0_11] : memref<100x32xf32, #tpu.memory_space<vmem>>, vector<1x32xf32>
    %cst_12 = arith.constant 5.65685415 : f32
    %21 = vector.broadcast %cst_12 : f32 to vector<1x32xf32>
    %22 = arith.mulf %20, %21 : vector<1x32xf32>
    %c2_13 = arith.constant 2 : index
    %c0_14 = arith.constant 0 : index
    %23 = vector.load %arg2[%c2_13, %c0_14] : memref<16x32xf32, #tpu.memory_space<vmem>>, vector<1x32xf32>
    tpu.vector_store %arg2[%c2_13, %c0_14], %22 {strides = array<i32>} : memref<16x32xf32, #tpu.memory_space<vmem>>, vector<1x32xf32>,
    %c3 = arith.constant 3 : index
    %24 = memref.load %arg0[%c3] : memref<16xi32, #tpu.memory_space<smem>>
    %c0_i32_15 = arith.constant 0 : i32
    %c99_i32_16 = arith.constant 99 : i32
    %25 = arith.maxsi %c0_i32_15, %24 : i32
    %26 = arith.minsi %c99_i32_16, %25 : i32
    %27 = arith.index_cast %26 : i32 to index
    %c0_17 = arith.constant 0 : index
    %28 = vector.load %arg1[%27, %c0_17] : memref<100x32xf32, #tpu.memory_space<vmem>>, vector<1x32xf32>
    %cst_18 = arith.constant 5.65685415 : f32
    %29 = vector.broadcast %cst_18 : f32 to vector<1x32xf32>
    %30 = arith.mulf %28, %29 : vector<1x32xf32>
    %c3_19 = arith.constant 3 : index
    %c0_20 = arith.constant 0 : index
    %31 = vector.load %arg2[%c3_19, %c0_20] : memref<16x32xf32, #tpu.memory_space<vmem>>, vector<1x32xf32>
    tpu.vector_store %arg2[%c3_19, %c0_20], %30 {strides = array<i32>} : memref<16x32xf32, #tpu.memory_space<vmem>>, vector<1x32xf32>,
    %c4 = arith.constant 4 : index
    %32 = memref.load %arg0[%c4] : memref<16xi32, #tpu.memory_space<smem>>
    %c0_i32_21 = arith.constant 0 : i32
    %c99_i32_22 = arith.constant 99 : i32
    %33 = arith.maxsi %c0_i32_21, %32 : i32
    %34 = arith.minsi %c99_i32_22, %33 : i32
    %35 = arith.index_cast %34 : i32 to index
    %c0_23 = arith.constant 0 : index
    %36 = vector.load %arg1[%35, %c0_23] : memref<100x32xf32, #tpu.memory_space<vmem>>, vector<1x32xf32>
    %cst_24 = arith.constant 5.65685415 : f32
    %37 = vector.broadcast %cst_24 : f32 to vector<1x32xf32>
    %38 = arith.mulf %36, %37 : vector<1x32xf32>
    %c4_25 = arith.constant 4 : index
    %c0_26 = arith.constant 0 : index
    %39 = vector.load %arg2[%c4_25, %c0_26] : memref<16x32xf32, #tpu.memory_space<vmem>>, vector<1x32xf32>
    tpu.vector_store %arg2[%c4_25, %c0_26], %38 {strides = array<i32>} : memref<16x32xf32, #tpu.memory_space<vmem>>, vector<1x32xf32>,
    %c5 = arith.constant 5 : index
    %40 = memref.load %arg0[%c5] : memref<16xi32, #tpu.memory_space<smem>>
    %c0_i32_27 = arith.constant 0 : i32
    %c99_i32_28 = arith.constant 99 : i32
    %41 = arith.maxsi %c0_i32_27, %40 : i32
    %42 = arith.minsi %c99_i32_28, %41 : i32
    %43 = arith.index_cast %42 : i32 to index
    %c0_29 = arith.constant 0 : index
    %44 = vector.load %arg1[%43, %c0_29] : memref<100x32xf32, #tpu.memory_space<vmem>>, vector<1x32xf32>
    %cst_30 = arith.constant 5.65685415 : f32
    %45 = vector.broadcast %cst_30 : f32 to vector<1x32xf32>
    %46 = arith.mulf %44, %45 : vector<1x32xf32>
    %c5_31 = arith.constant 5 : index
    %c0_32 = arith.constant 0 : index
    %47 = vector.load %arg2[%c5_31, %c0_32] : memref<16x32xf32, #tpu.memory_space<vmem>>, vector<1x32xf32>
    tpu.vector_store %arg2[%c5_31, %c0_32], %46 {strides = array<i32>} : memref<16x32xf32, #tpu.memory_space<vmem>>, vector<1x32xf32>,
    %c6 = arith.constant 6 : index
    %48 = memref.load %arg0[%c6] : memref<16xi32, #tpu.memory_space<smem>>
    %c0_i32_33 = arith.constant 0 : i32
    %c99_i32_34 = arith.constant 99 : i32
    %49 = arith.maxsi %c0_i32_33, %48 : i32
    %50 = arith.minsi %c99_i32_34, %49 : i32
    %51 = arith.index_cast %50 : i32 to index
    %c0_35 = arith.constant 0 : index
    %52 = vector.load %arg1[%51, %c0_35] : memref<100x32xf32, #tpu.memory_space<vmem>>, vector<1x32xf32>
    %cst_36 = arith.constant 5.65685415 : f32
    %53 = vector.broadcast %cst_36 : f32 to vector<1x32xf32>
    %54 = arith.mulf %52, %53 : vector<1x32xf32>
    %c6_37 = arith.constant 6 : index
    %c0_38 = arith.constant 0 : index
    %55 = vector.load %arg2[%c6_37, %c0_38] : memref<16x32xf32, #tpu.memory_space<vmem>>, vector<1x32xf32>
    tpu.vector_store %arg2[%c6_37, %c0_38], %54 {strides = array<i32>} : memref<16x32xf32, #tpu.memory_space<vmem>>, vector<1x32xf32>,
    %c7 = arith.constant 7 : index
    %56 = memref.load %arg0[%c7] : memref<16xi32, #tpu.memory_space<smem>>
    %c0_i32_39 = arith.constant 0 : i32
    %c99_i32_40 = arith.constant 99 : i32
    %57 = arith.maxsi %c0_i32_39, %56 : i32
    %58 = arith.minsi %c99_i32_40, %57 : i32
    %59 = arith.index_cast %58 : i32 to index
    %c0_41 = arith.constant 0 : index
    %60 = vector.load %arg1[%59, %c0_41] : memref<100x32xf32, #tpu.memory_space<vmem>>, vector<1x32xf32>
    %cst_42 = arith.constant 5.65685415 : f32
    %61 = vector.broadcast %cst_42 : f32 to vector<1x32xf32>
    %62 = arith.mulf %60, %61 : vector<1x32xf32>
    %c7_43 = arith.constant 7 : index
    %c0_44 = arith.constant 0 : index
    %63 = vector.load %arg2[%c7_43, %c0_44] : memref<16x32xf32, #tpu.memory_space<vmem>>, vector<1x32xf32>
    tpu.vector_store %arg2[%c7_43, %c0_44], %62 {strides = array<i32>} : memref<16x32xf32, #tpu.memory_space<vmem>>, vector<1x32xf32>,
    %c8 = arith.constant 8 : index
    %64 = memref.load %arg0[%c8] : memref<16xi32, #tpu.memory_space<smem>>
    %c0_i32_45 = arith.constant 0 : i32
    %c99_i32_46 = arith.constant 99 : i32
    %65 = arith.maxsi %c0_i32_45, %64 : i32
    %66 = arith.minsi %c99_i32_46, %65 : i32
    %67 = arith.index_cast %66 : i32 to index
    %c0_47 = arith.constant 0 : index
    %68 = vector.load %arg1[%67, %c0_47] : memref<100x32xf32, #tpu.memory_space<vmem>>, vector<1x32xf32>
    %cst_48 = arith.constant 5.65685415 : f32
    %69 = vector.broadcast %cst_48 : f32 to vector<1x32xf32>
    %70 = arith.mulf %68, %69 : vector<1x32xf32>
    %c8_49 = arith.constant 8 : index
    %c0_50 = arith.constant 0 : index
    %71 = vector.load %arg2[%c8_49, %c0_50] : memref<16x32xf32, #tpu.memory_space<vmem>>, vector<1x32xf32>
    tpu.vector_store %arg2[%c8_49, %c0_50], %70 {strides = array<i32>} : memref<16x32xf32, #tpu.memory_space<vmem>>, vector<1x32xf32>,
    %c9 = arith.constant 9 : index
    %72 = memref.load %arg0[%c9] : memref<16xi32, #tpu.memory_space<smem>>
    %c0_i32_51 = arith.constant 0 : i32
    %c99_i32_52 = arith.constant 99 : i32
    %73 = arith.maxsi %c0_i32_51, %72 : i32
    %74 = arith.minsi %c99_i32_52, %73 : i32
    %75 = arith.index_cast %74 : i32 to index
    %c0_53 = arith.constant 0 : index
    %76 = vector.load %arg1[%75, %c0_53] : memref<100x32xf32, #tpu.memory_space<vmem>>, vector<1x32xf32>
    %cst_54 = arith.constant 5.65685415 : f32
    %77 = vector.broadcast %cst_54 : f32 to vector<1x32xf32>
    %78 = arith.mulf %76, %77 : vector<1x32xf32>
    %c9_55 = arith.constant 9 : index
    %c0_56 = arith.constant 0 : index
    %79 = vector.load %arg2[%c9_55, %c0_56] : memref<16x32xf32, #tpu.memory_space<vmem>>, vector<1x32xf32>
    tpu.vector_store %arg2[%c9_55, %c0_56], %78 {strides = array<i32>} : memref<16x32xf32, #tpu.memory_space<vmem>>, vector<1x32xf32>,
    %c10 = arith.constant 10 : index
    %80 = memref.load %arg0[%c10] : memref<16xi32, #tpu.memory_space<smem>>
    %c0_i32_57 = arith.constant 0 : i32
    %c99_i32_58 = arith.constant 99 : i32
    %81 = arith.maxsi %c0_i32_57, %80 : i32
    %82 = arith.minsi %c99_i32_58, %81 : i32
    %83 = arith.index_cast %82 : i32 to index
    %c0_59 = arith.constant 0 : index
    %84 = vector.load %arg1[%83, %c0_59] : memref<100x32xf32, #tpu.memory_space<vmem>>, vector<1x32xf32>
    %cst_60 = arith.constant 5.65685415 : f32
    %85 = vector.broadcast %cst_60 : f32 to vector<1x32xf32>
    %86 = arith.mulf %84, %85 : vector<1x32xf32>
    %c10_61 = arith.constant 10 : index
    %c0_62 = arith.constant 0 : index
    %87 = vector.load %arg2[%c10_61, %c0_62] : memref<16x32xf32, #tpu.memory_space<vmem>>, vector<1x32xf32>
    tpu.vector_store %arg2[%c10_61, %c0_62], %86 {strides = array<i32>} : memref<16x32xf32, #tpu.memory_space<vmem>>, vector<1x32xf32>,
    %c11 = arith.constant 11 : index
    %88 = memref.load %arg0[%c11] : memref<16xi32, #tpu.memory_space<smem>>
    %c0_i32_63 = arith.constant 0 : i32
    %c99_i32_64 = arith.constant 99 : i32
    %89 = arith.maxsi %c0_i32_63, %88 : i32
    %90 = arith.minsi %c99_i32_64, %89 : i32
    %91 = arith.index_cast %90 : i32 to index
    %c0_65 = arith.constant 0 : index
    %92 = vector.load %arg1[%91, %c0_65] : memref<100x32xf32, #tpu.memory_space<vmem>>, vector<1x32xf32>
    %cst_66 = arith.constant 5.65685415 : f32
    %93 = vector.broadcast %cst_66 : f32 to vector<1x32xf32>
    %94 = arith.mulf %92, %93 : vector<1x32xf32>
    %c11_67 = arith.constant 11 : index
    %c0_68 = arith.constant 0 : index
    %95 = vector.load %arg2[%c11_67, %c0_68] : memref<16x32xf32, #tpu.memory_space<vmem>>, vector<1x32xf32>
    tpu.vector_store %arg2[%c11_67, %c0_68], %94 {strides = array<i32>} : memref<16x32xf32, #tpu.memory_space<vmem>>, vector<1x32xf32>,
    %c12 = arith.constant 12 : index
    %96 = memref.load %arg0[%c12] : memref<16xi32, #tpu.memory_space<smem>>
    %c0_i32_69 = arith.constant 0 : i32
    %c99_i32_70 = arith.constant 99 : i32
    %97 = arith.maxsi %c0_i32_69, %96 : i32
    %98 = arith.minsi %c99_i32_70, %97 : i32
    %99 = arith.index_cast %98 : i32 to index
    %c0_71 = arith.constant 0 : index
    %100 = vector.load %arg1[%99, %c0_71] : memref<100x32xf32, #tpu.memory_space<vmem>>, vector<1x32xf32>
    %cst_72 = arith.constant 5.65685415 : f32
    %101 = vector.broadcast %cst_72 : f32 to vector<1x32xf32>
    %102 = arith.mulf %100, %101 : vector<1x32xf32>
    %c12_73 = arith.constant 12 : index
    %c0_74 = arith.constant 0 : index
    %103 = vector.load %arg2[%c12_73, %c0_74] : memref<16x32xf32, #tpu.memory_space<vmem>>, vector<1x32xf32>
    tpu.vector_store %arg2[%c12_73, %c0_74], %102 {strides = array<i32>} : memref<16x32xf32, #tpu.memory_space<vmem>>, vector<1x32xf32>,
    %c13 = arith.constant 13 : index
    %104 = memref.load %arg0[%c13] : memref<16xi32, #tpu.memory_space<smem>>
    %c0_i32_75 = arith.constant 0 : i32
    %c99_i32_76 = arith.constant 99 : i32
    %105 = arith.maxsi %c0_i32_75, %104 : i32
    %106 = arith.minsi %c99_i32_76, %105 : i32
    %107 = arith.index_cast %106 : i32 to index
    %c0_77 = arith.constant 0 : index
    %108 = vector.load %arg1[%107, %c0_77] : memref<100x32xf32, #tpu.memory_space<vmem>>, vector<1x32xf32>
    %cst_78 = arith.constant 5.65685415 : f32
    %109 = vector.broadcast %cst_78 : f32 to vector<1x32xf32>
    %110 = arith.mulf %108, %109 : vector<1x32xf32>
    %c13_79 = arith.constant 13 : index
    %c0_80 = arith.constant 0 : index
    %111 = vector.load %arg2[%c13_79, %c0_80] : memref<16x32xf32, #tpu.memory_space<vmem>>, vector<1x32xf32>
    tpu.vector_store %arg2[%c13_79, %c0_80], %110 {strides = array<i32>} : memref<16x32xf32, #tpu.memory_space<vmem>>, vector<1x32xf32>,
    %c14 = arith.constant 14 : index
    %112 = memref.load %arg0[%c14] : memref<16xi32, #tpu.memory_space<smem>>
    %c0_i32_81 = arith.constant 0 : i32
    %c99_i32_82 = arith.constant 99 : i32
    %113 = arith.maxsi %c0_i32_81, %112 : i32
    %114 = arith.minsi %c99_i32_82, %113 : i32
    %115 = arith.index_cast %114 : i32 to index
    %c0_83 = arith.constant 0 : index
    %116 = vector.load %arg1[%115, %c0_83] : memref<100x32xf32, #tpu.memory_space<vmem>>, vector<1x32xf32>
    %cst_84 = arith.constant 5.65685415 : f32
    %117 = vector.broadcast %cst_84 : f32 to vector<1x32xf32>
    %118 = arith.mulf %116, %117 : vector<1x32xf32>
    %c14_85 = arith.constant 14 : index
    %c0_86 = arith.constant 0 : index
    %119 = vector.load %arg2[%c14_85, %c0_86] : memref<16x32xf32, #tpu.memory_space<vmem>>, vector<1x32xf32>
    tpu.vector_store %arg2[%c14_85, %c0_86], %118 {strides = array<i32>} : memref<16x32xf32, #tpu.memory_space<vmem>>, vector<1x32xf32>,
    %c15 = arith.constant 15 : index
    %120 = memref.load %arg0[%c15] : memref<16xi32, #tpu.memory_space<smem>>
    %c0_i32_87 = arith.constant 0 : i32
    %c99_i32_88 = arith.constant 99 : i32
    %121 = arith.maxsi %c0_i32_87, %120 : i32
    %122 = arith.minsi %c99_i32_88, %121 : i32
    %123 = arith.index_cast %122 : i32 to index
    %c0_89 = arith.constant 0 : index
    %124 = vector.load %arg1[%123, %c0_89] : memref<100x32xf32, #tpu.memory_space<vmem>>, vector<1x32xf32>
    %cst_90 = arith.constant 5.65685415 : f32
    %125 = vector.broadcast %cst_90 : f32 to vector<1x32xf32>
    %126 = arith.mulf %124, %125 : vector<1x32xf32>
    %c15_91 = arith.constant 15 : index
    %c0_92 = arith.constant 0 : index
    %127 = vector.load %arg2[%c15_91, %c0_92] : memref<16x32xf32, #tpu.memory_space<vmem>>, vector<1x32xf32>
    tpu.vector_store %arg2[%c15_91, %c0_92], %126 {strides = array<i32>} : memref<16x32xf32, #tpu.memory_space<vmem>>, vector<1x32xf32>,
    return
  }
}

</mosaic_0001>

<llo_original>
// kernel: tpu_custom_call.1
$region0: #{tpu_custom_call.1}
  #allocation0 [shape = 'u32[]', space=smem, size = 0x4, offset = 0x4, fixed_abs, tag = 'smem constant byte address 0x4 - core index']
  #allocation1 [shape = 'u32[144,128]{1,0:T(1,128)}', space=vmem, size = 0x12000, scoped, tag = 'internal scratch']
  %s0 = inlined_call_operand.vmem [shape: s32[16], index: 0, kind: input, shape index: {}]
  %s1 = inlined_call_operand.vmem [shape: f32[100,32], index: 1, kind: input, shape index: {}]
  %s2 = inlined_call_operand.hbm [shape: f32[16,32], index: 2, kind: output, shape index: {}]
  %s3 = sld [smem:[#allocation0]]
  $region22: #{tpu_custom_call.1} parent=0
    _
  %s5 = ssub.s32 1, %s3
  %s6 = scalar_select 0, %s5, %s3
  $region1: #{tpu_custom_call.1} parent=0
    #allocation2 [shape = 'u8[512]{0}', space=smem, size = 0x200, scoped, tag = 'input window, operand 0, single buffered']
    #allocation3 [shape = 's32[1]{0}', space=sflag, size = 0x4, scoped, tag = 'scoped memory for tpu_custom_call.1']
    #allocation4 [shape = 's32[1]{0}', space=sflag, size = 0x4, scoped, tag = 'scoped memory for tpu_custom_call.1']
    #allocation5 [shape = 'u8[8192]{0}', space=vmem, size = 0x2000, scoped, tag = 'output window, operand 0, single buffered']
    %7 = vsyncpa [#allocation4], 0
    %8 = vsyncpa [#allocation3], 0
    // Predicated region
    $region2: #{tpu_custom_call.1} parent=1 // pred_check
      _
    $region3: #{tpu_custom_call.1} parent=1 // pred_check_branch
      %10 = sbr.rel (0) target = $region5
    $region4: #{tpu_custom_call.1} parent=1 // pred_region
      %s12 = ssub.s32 16, 16
      %13 = vsyncadd [#allocation4], %s12
      %s15 = sshll.u32 %s0, 4
      %s16 = int_to_ptr.vmem [resolvable:$true] %s15
      %18 = dma.vmem_to_smem %s16, 16, [#allocation2], [#allocation4]
    $region5: #{tpu_custom_call.1} parent=1 // pred_fallthru
      _
    // Predicated region
    $region6: #{tpu_custom_call.1} parent=1 // pred_check
      _
    $region7: #{tpu_custom_call.1} parent=1 // pred_check_branch
      %20 = sbr.rel (0) target = $region9
    $region8: #{tpu_custom_call.1} parent=1 // pred_region
      _
    $region9: #{tpu_custom_call.1} parent=1 // pred_fallthru
      _
    // Predicated region
    $region10: #{tpu_custom_call.1} parent=1 // pred_check
      _
    $region11: #{tpu_custom_call.1} parent=1 // pred_check_branch
      %22 = sbr.rel (0) target = $region13
    $region12: #{tpu_custom_call.1} parent=1 // pred_region
      %23 = dma.done [#allocation4], 16
    $region13: #{tpu_custom_call.1} parent=1 // pred_fallthru
      _
    %24 = sfence
    %s25 = sld [smem:[#allocation2]]
    %p26 = scmp.gt.s32.totalorder %s25, 0
    %s27 = scalar_select %p26, %s25, 0
    %p28 = scmp.lt.s32.totalorder %s27, 99
    %s29 = scalar_select %p28, %s27, 99
    %s30 = scalar_lea.vmem %s1, %s29
    %v31 = vld [vmem:[%s30] sm:$0x1]
    %v32 = vmul.f32 %v31, 5.656854
    %vm33 = vcmask 253952
    %34 = vst.msk [vmem:[#allocation5] sm:$0x1] %vm33, %v32
    %s35 = sld [smem:[#allocation2 + $0x1]]
    %p36 = scmp.gt.s32.totalorder %s35, 0
    %s37 = scalar_select %p36, %s35, 0
    %p38 = scmp.lt.s32.totalorder %s37, 99
    %s39 = scalar_select %p38, %s37, 99
    %s40 = scalar_lea.vmem %s1, %s39
    %v41 = vld [vmem:[%s40] sm:$0x1]
    %v42 = vmul.f32 %v41, 5.656854
    %43 = vst.msk [vmem:[#allocation5 + $0x1] sm:$0x1] %vm33, %v42
    %s44 = sld [smem:[#allocation2 + $0x2]]
    %p45 = scmp.gt.s32.totalorder %s44, 0
    %s46 = scalar_select %p45, %s44, 0
    %p47 = scmp.lt.s32.totalorder %s46, 99
    %s48 = scalar_select %p47, %s46, 99
    %s49 = scalar_lea.vmem %s1, %s48
    %v50 = vld [vmem:[%s49] sm:$0x1]
    %v51 = vmul.f32 %v50, 5.656854
    %52 = vst.msk [vmem:[#allocation5 + $0x2] sm:$0x1] %vm33, %v51
    %s53 = sld [smem:[#allocation2 + $0x3]]
    %p54 = scmp.gt.s32.totalorder %s53, 0
    %s55 = scalar_select %p54, %s53, 0
    %p56 = scmp.lt.s32.totalorder %s55, 99
    %s57 = scalar_select %p56, %s55, 99
    %s58 = scalar_lea.vmem %s1, %s57
    %v59 = vld [vmem:[%s58] sm:$0x1]
    %v60 = vmul.f32 %v59, 5.656854
    %61 = vst.msk [vmem:[#allocation5 + $0x3] sm:$0x1] %vm33, %v60
    %s62 = sld [smem:[#allocation2 + $0x4]]
    %p63 = scmp.gt.s32.totalorder %s62, 0
    %s64 = scalar_select %p63, %s62, 0
    %p65 = scmp.lt.s32.totalorder %s64, 99
    %s66 = scalar_select %p65, %s64, 99
    %s67 = scalar_lea.vmem %s1, %s66
    %v68 = vld [vmem:[%s67] sm:$0x1]
    %v69 = vmul.f32 %v68, 5.656854
    %70 = vst.msk [vmem:[#allocation5 + $0x4] sm:$0x1] %vm33, %v69
    %s71 = sld [smem:[#allocation2 + $0x5]]
    %p72 = scmp.gt.s32.totalorder %s71, 0
    %s73 = scalar_select %p72, %s71, 0
    %p74 = scmp.lt.s32.totalorder %s73, 99
    %s75 = scalar_select %p74, %s73, 99
    %s76 = scalar_lea.vmem %s1, %s75
    %v77 = vld [vmem:[%s76] sm:$0x1]
    %v78 = vmul.f32 %v77, 5.656854
    %79 = vst.msk [vmem:[#allocation5 + $0x5] sm:$0x1] %vm33, %v78
    %s80 = sld [smem:[#allocation2 + $0x6]]
    %p81 = scmp.gt.s32.totalorder %s80, 0
    %s82 = scalar_select %p81, %s80, 0
    %p83 = scmp.lt.s32.totalorder %s82, 99
    %s84 = scalar_select %p83, %s82, 99
    %s85 = scalar_lea.vmem %s1, %s84
    %v86 = vld [vmem:[%s85] sm:$0x1]
    %v87 = vmul.f32 %v86, 5.656854
    %88 = vst.msk [vmem:[#allocation5 + $0x6] sm:$0x1] %vm33, %v87
    %s89 = sld [smem:[#allocation2 + $0x7]]
    %p90 = scmp.gt.s32.totalorder %s89, 0
    %s91 = scalar_select %p90, %s89, 0
    %p92 = scmp.lt.s32.totalorder %s91, 99
    %s93 = scalar_select %p92, %s91, 99
    %s94 = scalar_lea.vmem %s1, %s93
    %v95 = vld [vmem:[%s94] sm:$0x1]
    %v96 = vmul.f32 %v95, 5.656854
    %97 = vst.msk [vmem:[#allocation5 + $0x7] sm:$0x1] %vm33, %v96
    %s98 = sld [smem:[#allocation2 + $0x8]]
    %p99 = scmp.gt.s32.totalorder %s98, 0
    %s100 = scalar_select %p99, %s98, 0
    %p101 = scmp.lt.s32.totalorder %s100, 99
    %s102 = scalar_select %p101, %s100, 99
    %s103 = scalar_lea.vmem %s1, %s102
    %v104 = vld [vmem:[%s103] sm:$0x1]
    %v105 = vmul.f32 %v104, 5.656854
    %106 = vst.msk [vmem:[#allocation5 + $0x8] sm:$0x1] %vm33, %v105
    %s107 = sld [smem:[#allocation2 + $0x9]]
    %p108 = scmp.gt.s32.totalorder %s107, 0
    %s109 = scalar_select %p108, %s107, 0
    %p110 = scmp.lt.s32.totalorder %s109, 99
    %s111 = scalar_select %p110, %s109, 99
    %s112 = scalar_lea.vmem %s1, %s111
    %v113 = vld [vmem:[%s112] sm:$0x1]
    %v114 = vmul.f32 %v113, 5.656854
    %115 = vst.msk [vmem:[#allocation5 + $0x9] sm:$0x1] %vm33, %v114
    %s116 = sld [smem:[#allocation2 + $0xa]]
    %p117 = scmp.gt.s32.totalorder %s116, 0
    %s118 = scalar_select %p117, %s116, 0
    %p119 = scmp.lt.s32.totalorder %s118, 99
    %s120 = scalar_select %p119, %s118, 99
    %s121 = scalar_lea.vmem %s1, %s120
    %v122 = vld [vmem:[%s121] sm:$0x1]
    %v123 = vmul.f32 %v122, 5.656854
    %124 = vst.msk [vmem:[#allocation5 + $0xa] sm:$0x1] %vm33, %v123
    %s125 = sld [smem:[#allocation2 + $0xb]]
    %p126 = scmp.gt.s32.totalorder %s125, 0
    %s127 = scalar_select %p126, %s125, 0
    %p128 = scmp.lt.s32.totalorder %s127, 99
    %s129 = scalar_select %p128, %s127, 99
    %s130 = scalar_lea.vmem %s1, %s129
    %v131 = vld [vmem:[%s130] sm:$0x1]
    %v132 = vmul.f32 %v131, 5.656854
    %133 = vst.msk [vmem:[#allocation5 + $0xb] sm:$0x1] %vm33, %v132
    %s134 = sld [smem:[#allocation2 + $0xc]]
    %p135 = scmp.gt.s32.totalorder %s134, 0
    %s136 = scalar_select %p135, %s134, 0
    %p137 = scmp.lt.s32.totalorder %s136, 99
    %s138 = scalar_select %p137, %s136, 99
    %s139 = scalar_lea.vmem %s1, %s138
    %v140 = vld [vmem:[%s139] sm:$0x1]
    %v141 = vmul.f32 %v140, 5.656854
    %142 = vst.msk [vmem:[#allocation5 + $0xc] sm:$0x1] %vm33, %v141
    %s143 = sld [smem:[#allocation2 + $0xd]]
    %p144 = scmp.gt.s32.totalorder %s143, 0
    %s145 = scalar_select %p144, %s143, 0
    %p146 = scmp.lt.s32.totalorder %s145, 99
    %s147 = scalar_select %p146, %s145, 99
    %s148 = scalar_lea.vmem %s1, %s147
    %v149 = vld [vmem:[%s148] sm:$0x1]
    %v150 = vmul.f32 %v149, 5.656854
    %151 = vst.msk [vmem:[#allocation5 + $0xd] sm:$0x1] %vm33, %v150
    %s152 = sld [smem:[#allocation2 + $0xe]]
    %p153 = scmp.gt.s32.totalorder %s152, 0
    %s154 = scalar_select %p153, %s152, 0
    %p155 = scmp.lt.s32.totalorder %s154, 99
    %s156 = scalar_select %p155, %s154, 99
    %s157 = scalar_lea.vmem %s1, %s156
    %v158 = vld [vmem:[%s157] sm:$0x1]
    %v159 = vmul.f32 %v158, 5.656854
    %160 = vst.msk [vmem:[#allocation5 + $0xe] sm:$0x1] %vm33, %v159
    %s161 = sld [smem:[#allocation2 + $0xf]]
    %p162 = scmp.gt.s32.totalorder %s161, 0
    %s163 = scalar_select %p162, %s161, 0
    %p164 = scmp.lt.s32.totalorder %s163, 99
    %s165 = scalar_select %p164, %s163, 99
    %s166 = scalar_lea.vmem %s1, %s165
    %v167 = vld [vmem:[%s166] sm:$0x1]
    %v168 = vmul.f32 %v167, 5.656854
    %169 = vst.msk [vmem:[#allocation5 + $0xf] sm:$0x1] %vm33, %v168
    // Predicated region
    $region14: #{tpu_custom_call.1} parent=1 // pred_check
      _
    $region15: #{tpu_custom_call.1} parent=1 // pred_check_branch
      %171 = sbr.rel (0) target = $region17
    $region16: #{tpu_custom_call.1} parent=1 // pred_region
      %s173 = ssub.s32 256, 256
      %174 = vsyncadd [#allocation3], %s173
      %s175 = sshll.u32 [#allocation5], 4
      %s176 = int_to_ptr.vmem [resolvable:$true] %s175
      %181 = dma.vmem_to_hbm [thread:$0]  %s176, 256, %s2, [#allocation3], 128, 128, 8
    $region17: #{tpu_custom_call.1} parent=1 // pred_fallthru
      _
    // Predicated region
    $region18: #{tpu_custom_call.1} parent=1 // pred_check
      _
    $region19: #{tpu_custom_call.1} parent=1 // pred_check_branch
      %183 = sbr.rel (0) target = $region21
    $region20: #{tpu_custom_call.1} parent=1 // pred_region
      %184 = dma.done [#allocation3], 256
    $region21: #{tpu_custom_call.1} parent=1 // pred_fallthru
      _
    %185 = vsyncpa [#allocation3], 1
    %186 = vsyncpa [#allocation4], 1

</llo_original>
